<compile_context>
chip_gen: v6e
topology: v6e:2x2x1
jax: 0.10.0
libtpu: 0.0.40
codegen_flags: <defaults>
</compile_context>

<pallas_src>
import math

import jax
import jax.numpy as jnp
from jax.experimental import pallas as pl
from jax.experimental.pallas import tpu as pltpu

# ----------------------------- model hyper-params ---------------------------
D_MODEL = 128            # (PyTorch default is 768; small-shape run per task spec)
NUM_HEADS = 8
HEAD_DIM = D_MODEL // NUM_HEADS
NUM_CLASSES = 1

BATCH = 2
IMG_C, IMG_H, IMG_W = 3, 16, 16
IMG_FLAT = IMG_C * IMG_H * IMG_W
SEQ_LEN = 8
VOCAB = 64


# ------------------------------- Pallas kernel ------------------------------
def ca_fusion_kernel(bag_ref, pix_ref, w_txt_ref, w_img_ref,
                     w_q_ref, w_kv_ref, b_qkv_ref, seg_ref,
                     w_of_ref, b_of_ref, out_ref, attn_out_ref):
    f32 = jnp.float32
    bf16 = jnp.bfloat16

    # ---- stand-in frozen "pooler" feature extractors (one fused matmul each) ----
    text_feat = jnp.tanh(jnp.dot(bag_ref[...].astype(bf16), w_txt_ref[...],
                                 preferred_element_type=f32))                # (B, D)
    img_feat = jnp.tanh(jnp.dot(pix_ref[...].astype(bf16), w_img_ref[...],
                                preferred_element_type=f32))                 # (B, D)

    # ---- in_proj: q (softmax scale pre-folded), fused 256-wide [k|v] matmul ----
    q = jnp.dot(text_feat.astype(bf16), w_q_ref[...],
                preferred_element_type=f32) + b_qkv_ref[:, :D_MODEL]         # (B, D)
    kv = jnp.dot(img_feat.astype(bf16), w_kv_ref[...],
                 preferred_element_type=f32) + b_qkv_ref[:, D_MODEL:]        # (B, 2D)
    k = kv[:, :D_MODEL]
    v = kv[:, D_MODEL:]

    # ---- all 8 heads at once via the precomputed block-diagonal head-broadcast
    #      matrix seg (D, D): seg[d, d'] = 1 iff head(d) == head(d').
    #      s_j[i, d'] = sum_{d in head(d')} q[i, d] * k[j, d]  -> per-head score,
    #      already lane-broadcast across that head's 16 lanes.              ----
    seg = seg_ref[...]                                                       # (D, D) f32
    s = [jnp.dot(q * k[j:j + 1, :], seg, preferred_element_type=f32)
         for j in range(BATCH)]                                              # each (B, D)
    m = s[0]
    for j in range(1, BATCH):
        m = jnp.maximum(m, s[j])
    e = [jnp.exp(sj - m) for sj in s]
    den = e[0]
    for j in range(1, BATCH):
        den = den + e[j]
    inv_den = pl.reciprocal(den, approx=True)                                # (B, D)

    # attn[i, d] = sum_j softmax_j(s)[i, head(d)] * v[j, d]   (VPU weighted sum)
    attn = (e[0] * inv_den) * v[0:1, :]
    for j in range(1, BATCH):
        attn = attn + (e[j] * inv_den) * v[j:j + 1, :]
    attn_out_ref[...] = attn                                                 # verification output

    # ---- fused out_proj + fc (single (D, C) matmul), then softmax over classes ----
    # NUM_CLASSES == 1 -> scalar fused bias read from SMEM.
    logits = jnp.dot(attn, w_of_ref[...], preferred_element_type=f32) + b_of_ref[0]
    lg = logits - jnp.max(logits, axis=1, keepdims=True)
    el = jnp.exp(lg)
    out_ref[...] = el / jnp.sum(el, axis=1, keepdims=True)


def ca_fusion_pallas(bag_n, pixel_flat, packed):
    """Single grid point; every operand is whole-array resident in VMEM (<0.5 MiB).

    # TODO(synk): if scaled to real shapes (d_model=768, large batch), add a grid
    # with dimension_semantics=("parallel", ...) so both v7x TensorCores are used.
    """
    vmem = pl.BlockSpec(memory_space=pltpu.MemorySpace.VMEM)
    smem = pl.BlockSpec(memory_space=pltpu.MemorySpace.SMEM)
    return pl.pallas_call(
        ca_fusion_kernel,
        out_shape=(jax.ShapeDtypeStruct((BATCH, NUM_CLASSES), jnp.float32),
                   jax.ShapeDtypeStruct((BATCH, D_MODEL), jnp.float32)),
        in_specs=[vmem] * 9 + [smem],
        out_specs=(vmem, vmem),
    )(bag_n, pixel_flat,
      packed["w_txt"], packed["w_img"],
      packed["w_q"], packed["w_kv"], packed["b_qkv"], packed["seg"],
      packed["w_of"], packed["b_of"])


def forward(pixel, input_ids, attention_mask, packed):
    # Tiny wrapper glue: token ids -> masked, mean-normalized bag-of-words weights.
    # The embedding matmul itself (bag @ folded_embed) runs inside the kernel.
    onehot = jax.nn.one_hot(input_ids, VOCAB, dtype=jnp.float32)             # (B, S, V)
    bag = jnp.einsum('bsv,bs->bv', onehot, attention_mask)                   # (B, V)
    bag_n = bag / jnp.sum(attention_mask, axis=1, keepdims=True)
    pixel_flat = pixel.reshape(BATCH, -1)                                    # (B, C*H*W)
    return ca_fusion_pallas(bag_n, pixel_flat, packed)


forward_jit = jax.jit(forward)


# ----------------------------- parameter packing -----------------------------
def pack_params(params, embed_table, w_tp, w_ip):
    """Pack/transpose/fuse all weights ONCE (no per-call wrapper transposes)."""
    f32, bf16 = jnp.float32, jnp.bfloat16
    scale = 1.0 / math.sqrt(HEAD_DIM)
    # fold out_proj + fc:  (a @ wo.T + bo) @ wfc.T + bfc == a @ (wo.T @ wfc.T) + (bo @ wfc.T + bfc)
    w_of = params["wo"].T @ params["wfc"].T                                   # (D, C)
    b_of = params["bo"] @ params["wfc"].T + params["bfc"]                     # (C,)
    # block-diagonal head-broadcast matrix: seg[d, d'] = 1 iff head(d) == head(d')
    head = jnp.arange(D_MODEL) // HEAD_DIM
    seg = (head[:, None] == head[None, :]).astype(f32)                        # (D, D)
    return {
        "w_txt": (embed_table @ w_tp).astype(bf16),                           # (V, D) folded text pooler
        "w_img": w_ip.astype(bf16),                                           # (C*H*W, D)
        "w_q":   (params["wq"].T * scale).astype(bf16),                       # (D, D), 1/sqrt(hd) folded
        "w_kv":  jnp.concatenate([params["wk"].T, params["wv"].T],
                                 axis=1).astype(bf16),                        # (D, 2D)
        "b_qkv": jnp.concatenate([params["bq"] * scale, params["bk"],
                                  params["bv"]]).reshape(1, 3 * D_MODEL).astype(f32),
        "seg":   seg,                                                         # (D, D), f32 (exact 0/1)
        "w_of":  w_of.astype(f32),                                            # (D, C), tiny -> keep f32
        "b_of":  b_of.reshape(NUM_CLASSES).astype(f32),                       # (C,) scalar -> SMEM
    }


# ----------------------------- pure-JAX reference ----------------------------
def ca_fusion_ref(pixel, input_ids, attention_mask, params, packed):
    """Straightforward per-head formulation (un-fused out_proj + fc), emulating
    the kernel's bf16 MXU operands, to cross-check the restructured kernel."""
    f32 = jnp.float32
    bf = lambda x: x.astype(jnp.bfloat16).astype(f32)

    onehot = jax.nn.one_hot(input_ids, VOCAB, dtype=f32)
    bag = jnp.einsum('bsv,bs->bv', onehot, attention_mask)
    bag_n = bag / jnp.sum(attention_mask, axis=1, keepdims=True)
    text_feat = jnp.tanh(bf(bag_n) @ packed["w_txt"].astype(f32))
    img_feat = jnp.tanh(bf(pixel.reshape(BATCH, -1)) @ packed["w_img"].astype(f32))

    q = bf(text_feat) @ packed["w_q"].astype(f32) + packed["b_qkv"][:, :D_MODEL]
    kv = bf(img_feat) @ packed["w_kv"].astype(f32) + packed["b_qkv"][:, D_MODEL:]
    k, v = kv[:, :D_MODEL], kv[:, D_MODEL:]

    outs = []
    for h in range(NUM_HEADS):
        sl = slice(h * HEAD_DIM, (h + 1) * HEAD_DIM)
        s = q[:, sl] @ k[:, sl].T                 # 1/sqrt(head_dim) already folded into q
        p = jax.nn.softmax(s, axis=-1)
        outs.append(p @ v[:, sl])
    attn = jnp.concatenate(outs, axis=-1)

    attn_out = attn @ params["wo"].T + params["bo"]
    logits = attn_out @ params["wfc"].T + params["bfc"]
    return jax.nn.softmax(logits, axis=1), attn


# ----------------------------------- main ------------------------------------
if __name__ == "__main__":
    key = jax.random.PRNGKey(0)
    keys = jax.random.split(key, 16)

    def init(k, shape, scale):
        return (scale * jax.random.normal(k, shape)).astype(jnp.float32)

    # Deterministic parameters (shapes follow nn.MultiheadAttention / nn.Linear).
    params = {
        "wq": init(keys[0], (D_MODEL, D_MODEL), 0.1),
        "wk": init(keys[1], (D_MODEL, D_MODEL), 0.1),
        "wv": init(keys[2], (D_MODEL, D_MODEL), 0.1),
        "bq": init(keys[3], (D_MODEL,), 0.1),
        "bk": init(keys[4], (D_MODEL,), 0.1),
        "bv": init(keys[5], (D_MODEL,), 0.1),
        "wo": init(keys[6], (D_MODEL, D_MODEL), 0.1),
        "bo": init(keys[7], (D_MODEL,), 0.1),
        "wfc": init(keys[8], (NUM_CLASSES, D_MODEL), 0.1),
        "bfc": init(keys[9], (NUM_CLASSES,), 0.1),
    }

    # TODO(synk): pretrained HF ViT/BERT pooler outputs are not translatable;
    # deterministic stand-in "pooler" projections are used instead.
    embed_table = init(keys[12], (VOCAB, D_MODEL), 1.0)
    w_tp = init(keys[13], (D_MODEL, D_MODEL), 0.1)
    w_ip = init(keys[14], (IMG_FLAT, D_MODEL), 0.1)

    packed = pack_params(params, embed_table, w_tp, w_ip)      # packed ONCE

    # Raw module inputs (pixel is NCHW like the PyTorch module).
    pixel = jax.random.normal(keys[10], (BATCH, IMG_C, IMG_H, IMG_W), jnp.float32)
    input_ids = jax.random.randint(keys[11], (BATCH, SEQ_LEN), 0, VOCAB)
    attention_mask = jnp.ones((BATCH, SEQ_LEN), jnp.float32)

    out, attn_k = forward_jit(pixel, input_ids, attention_mask, packed)
    out, attn_k = jax.block_until_ready((out, attn_k))

    ref_out, ref_attn = ca_fusion_ref(pixel, input_ids, attention_mask, params, packed)

    assert out.shape == (BATCH, NUM_CLASSES)
    # cross-attention path check (restructured all-heads kernel vs per-head reference)
    assert jnp.allclose(attn_k, ref_attn, atol=3e-2, rtol=5e-2), (
        float(jnp.max(jnp.abs(attn_k - ref_attn))))
    # module output (num_classes == 1 -> softmax over dim=1 is identically 1.0, as in PyTorch)
    assert jnp.allclose(out, ref_out, atol=1e-5)
    assert jnp.allclose(out, jnp.ones_like(out), atol=1e-6)

    print("KERNEL_OK")
</pallas_src>

<mosaic_0001>
module attributes {stable_mosaic.version = 11 : i64} {
  func.func @ca_fusion_kernel(%arg0: memref<2x64xf32, #tpu.memory_space<vmem>>, %arg1: memref<2x768xf32, #tpu.memory_space<vmem>>, %arg2: memref<64x128xbf16, #tpu.memory_space<vmem>>, %arg3: memref<768x128xbf16, #tpu.memory_space<vmem>>, %arg4: memref<128x128xbf16, #tpu.memory_space<vmem>>, %arg5: memref<128x256xbf16, #tpu.memory_space<vmem>>, %arg6: memref<1x384xf32, #tpu.memory_space<vmem>>, %arg7: memref<128x128xf32, #tpu.memory_space<vmem>>, %arg8: memref<128x1xf32, #tpu.memory_space<vmem>>, %arg9: memref<1xf32, #tpu.memory_space<smem>>, %arg10: memref<2x1xf32, #tpu.memory_space<vmem>>, %arg11: memref<2x128xf32, #tpu.memory_space<vmem>>) attributes {dimension_semantics = [], scalar_prefetch = 0 : i64, scratch_operands = 0 : i64, tpu.core_type = #tpu.core_type<tc>} {
    %c0 = arith.constant 0 : index
    %c0_0 = arith.constant 0 : index
    %0 = vector.load %arg0[%c0, %c0_0] : memref<2x64xf32, #tpu.memory_space<vmem>>, vector<2x64xf32>
    %1 = arith.truncf %0 : vector<2x64xf32> to vector<2x64xbf16>
    %c0_1 = arith.constant 0 : index
    %c0_2 = arith.constant 0 : index
    %2 = vector.load %arg2[%c0_1, %c0_2] : memref<64x128xbf16, #tpu.memory_space<vmem>>, vector<64x128xbf16>
    %cst = arith.constant dense<0.000000e+00> : vector<2x128xf32>
    %3 = tpu.matmul %1, %2, %cst {dimension_numbers = #tpu.dot_dimension_numbers<[1], [0], [0], [1], [0, 0, 1, 1], [], []>} : vector<2x64xbf16>, vector<64x128xbf16>, vector<2x128xf32> -> vector<2x128xf32>
    %4 = math.tanh %3 : vector<2x128xf32>
    %c0_3 = arith.constant 0 : index
    %c0_4 = arith.constant 0 : index
    %5 = vector.load %arg1[%c0_3, %c0_4] : memref<2x768xf32, #tpu.memory_space<vmem>>, vector<2x768xf32>
    %6 = arith.truncf %5 : vector<2x768xf32> to vector<2x768xbf16>
    %c0_5 = arith.constant 0 : index
    %c0_6 = arith.constant 0 : index
    %7 = vector.load %arg3[%c0_5, %c0_6] : memref<768x128xbf16, #tpu.memory_space<vmem>>, vector<768x128xbf16>
    %cst_7 = arith.constant dense<0.000000e+00> : vector<2x128xf32>
    %8 = tpu.matmul %6, %7, %cst_7 {dimension_numbers = #tpu.dot_dimension_numbers<[1], [0], [0], [1], [0, 0, 1, 1], [], []>} : vector<2x768xbf16>, vector<768x128xbf16>, vector<2x128xf32> -> vector<2x128xf32>
    %9 = math.tanh %8 : vector<2x128xf32>
    %10 = arith.truncf %4 : vector<2x128xf32> to vector<2x128xbf16>
    %c0_8 = arith.constant 0 : index
    %c0_9 = arith.constant 0 : index
    %11 = vector.load %arg4[%c0_8, %c0_9] : memref<128x128xbf16, #tpu.memory_space<vmem>>, vector<128x128xbf16>
    %cst_10 = arith.constant dense<0.000000e+00> : vector<2x128xf32>
    %12 = tpu.matmul %10, %11, %cst_10 {dimension_numbers = #tpu.dot_dimension_numbers<[1], [0], [0], [1], [0, 0, 1, 1], [], []>} : vector<2x128xbf16>, vector<128x128xbf16>, vector<2x128xf32> -> vector<2x128xf32>
    %c0_11 = arith.constant 0 : index
    %c0_12 = arith.constant 0 : index
    %13 = vector.load %arg6[%c0_11, %c0_12] : memref<1x384xf32, #tpu.memory_space<vmem>>, vector<1x128xf32>
    %14 = vector.broadcast %13 : vector<1x128xf32> to vector<2x128xf32>
    %15 = arith.addf %12, %14 : vector<2x128xf32>
    %16 = arith.truncf %9 : vector<2x128xf32> to vector<2x128xbf16>
    %c0_13 = arith.constant 0 : index
    %c0_14 = arith.constant 0 : index
    %17 = vector.load %arg5[%c0_13, %c0_14] : memref<128x256xbf16, #tpu.memory_space<vmem>>, vector<128x256xbf16>
    %cst_15 = arith.constant dense<0.000000e+00> : vector<2x256xf32>
    %18 = tpu.matmul %16, %17, %cst_15 {dimension_numbers = #tpu.dot_dimension_numbers<[1], [0], [0], [1], [0, 0, 1, 1], [], []>} : vector<2x128xbf16>, vector<128x256xbf16>, vector<2x256xf32> -> vector<2x256xf32>
    %c0_16 = arith.constant 0 : index
    %c128 = arith.constant 128 : index
    %19 = vector.load %arg6[%c0_16, %c128] : memref<1x384xf32, #tpu.memory_space<vmem>>, vector<1x256xf32>
    %20 = vector.broadcast %19 : vector<1x256xf32> to vector<2x256xf32>
    %21 = arith.addf %18, %20 : vector<2x256xf32>
    %22 = vector.extract_strided_slice %21 {offsets = [0, 0], sizes = [2, 128], strides = [1, 1]} : vector<2x256xf32> to vector<2x128xf32>
    %23 = vector.extract_strided_slice %21 {offsets = [0, 128], sizes = [2, 128], strides = [1, 1]} : vector<2x256xf32> to vector<2x128xf32>
    %c0_17 = arith.constant 0 : index
    %c0_18 = arith.constant 0 : index
    %24 = vector.load %arg7[%c0_17, %c0_18] : memref<128x128xf32, #tpu.memory_space<vmem>>, vector<128x128xf32>
    %25 = vector.extract_strided_slice %22 {offsets = [0, 0], sizes = [1, 128], strides = [1, 1]} : vector<2x128xf32> to vector<1x128xf32>
    %26 = vector.broadcast %25 : vector<1x128xf32> to vector<2x128xf32>
    %27 = arith.mulf %15, %26 : vector<2x128xf32>
    %cst_19 = arith.constant dense<0.000000e+00> : vector<2x128xf32>
    %28 = tpu.matmul %27, %24, %cst_19 {dimension_numbers = #tpu.dot_dimension_numbers<[1], [0], [0], [1], [0, 0, 1, 1], [], []>} : vector<2x128xf32>, vector<128x128xf32>, vector<2x128xf32> -> vector<2x128xf32>
    %29 = vector.extract_strided_slice %22 {offsets = [1, 0], sizes = [1, 128], strides = [1, 1]} : vector<2x128xf32> to vector<1x128xf32>
    %30 = vector.broadcast %29 : vector<1x128xf32> to vector<2x128xf32>
    %31 = arith.mulf %15, %30 : vector<2x128xf32>
    %cst_20 = arith.constant dense<0.000000e+00> : vector<2x128xf32>
    %32 = tpu.matmul %31, %24, %cst_20 {dimension_numbers = #tpu.dot_dimension_numbers<[1], [0], [0], [1], [0, 0, 1, 1], [], []>} : vector<2x128xf32>, vector<128x128xf32>, vector<2x128xf32> -> vector<2x128xf32>
    %33 = arith.maximumf %28, %32 : vector<2x128xf32>
    %34 = arith.subf %28, %33 : vector<2x128xf32>
    %35 = math.exp %34 : vector<2x128xf32>
    %36 = arith.subf %32, %33 : vector<2x128xf32>
    %37 = math.exp %36 : vector<2x128xf32>
    %38 = arith.addf %35, %37 : vector<2x128xf32>
    %39 = tpu.reciprocal %38 {approx = true} : vector<2x128xf32> -> vector<2x128xf32>
    %40 = arith.mulf %35, %39 : vector<2x128xf32>
    %41 = vector.extract_strided_slice %23 {offsets = [0, 0], sizes = [1, 128], strides = [1, 1]} : vector<2x128xf32> to vector<1x128xf32>
    %42 = vector.broadcast %41 : vector<1x128xf32> to vector<2x128xf32>
    %43 = arith.mulf %40, %42 : vector<2x128xf32>
    %44 = arith.mulf %37, %39 : vector<2x128xf32>
    %45 = vector.extract_strided_slice %23 {offsets = [1, 0], sizes = [1, 128], strides = [1, 1]} : vector<2x128xf32> to vector<1x128xf32>
    %46 = vector.broadcast %45 : vector<1x128xf32> to vector<2x128xf32>
    %47 = arith.mulf %44, %46 : vector<2x128xf32>
    %48 = arith.addf %43, %47 : vector<2x128xf32>
    %c0_21 = arith.constant 0 : index
    %c0_22 = arith.constant 0 : index
    %49 = vector.load %arg11[%c0_21, %c0_22] : memref<2x128xf32, #tpu.memory_space<vmem>>, vector<2x128xf32>
    tpu.vector_store %arg11[%c0_21, %c0_22], %48 {strides = array<i32>} : memref<2x128xf32, #tpu.memory_space<vmem>>, vector<2x128xf32>,
    %c0_23 = arith.constant 0 : index
    %c0_24 = arith.constant 0 : index
    %50 = vector.load %arg8[%c0_23, %c0_24] : memref<128x1xf32, #tpu.memory_space<vmem>>, vector<128x1xf32>
    %cst_25 = arith.constant dense<0.000000e+00> : vector<2x1xf32>
    %51 = tpu.matmul %48, %50, %cst_25 {dimension_numbers = #tpu.dot_dimension_numbers<[1], [0], [0], [1], [0, 0, 1, 1], [], []>} : vector<2x128xf32>, vector<128x1xf32>, vector<2x1xf32> -> vector<2x1xf32>
    %c0_26 = arith.constant 0 : index
    %52 = memref.load %arg9[%c0_26] : memref<1xf32, #tpu.memory_space<smem>>
    %53 = vector.broadcast %52 : f32 to vector<2x1xf32>
    %54 = arith.addf %51, %53 : vector<2x1xf32>
    %cst_27 = arith.constant dense<0xFF800000> : vector<2xf32>
    %55 = vector.multi_reduction <maximumf>, %54, %cst_27 [1] : vector<2x1xf32> to vector<2xf32>
    %56 = vector.shape_cast %55 : vector<2xf32> to vector<2x1xf32>
    %57 = arith.subf %54, %56 : vector<2x1xf32>
    %58 = math.exp %57 : vector<2x1xf32>
    %cst_28 = arith.constant dense<0.000000e+00> : vector<2xf32>
    %59 = vector.multi_reduction <add>, %58, %cst_28 [1] : vector<2x1xf32> to vector<2xf32>
    %60 = vector.shape_cast %59 : vector<2xf32> to vector<2x1xf32>
    %61 = arith.divf %58, %60 : vector<2x1xf32>
    %c0_29 = arith.constant 0 : index
    %c0_30 = arith.constant 0 : index
    %62 = vector.load %arg10[%c0_29, %c0_30] : memref<2x1xf32, #tpu.memory_space<vmem>>, vector<2x1xf32>
    tpu.vector_store %arg10[%c0_29, %c0_30], %61 {strides = array<i32>} : memref<2x1xf32, #tpu.memory_space<vmem>>, vector<2x1xf32>,
    return
  }
}

</mosaic_0001>

<llo_original>
// kernel: forward.1
$region0: #{forward.1}
  #allocation0 [shape = 'u32[]', space=smem, size = 0x4, offset = 0x4, fixed_abs, tag = 'smem constant byte address 0x4 - core index']
  #allocation1 [shape = 'u32[144,128]{1,0:T(1,128)}', space=vmem, size = 0x12000, scoped, tag = 'internal scratch']
  #allocation2 [shape = 'f32[1]{0:T(128)S(6)}', space=smem, size = 0x200, scoped, tag = 'scoped memory for forward.1']
  %s0 = inlined_call_operand.vmem [shape: f32[2,64], index: 0, kind: input, shape index: {}]
  %s1 = inlined_call_operand.vmem [shape: f32[2,768], index: 1, kind: input, shape index: {}]
  %s2 = inlined_call_operand.hbm [shape: bf16[64,128], index: 2, kind: input, shape index: {}]
  %s3 = inlined_call_operand.hbm [shape: bf16[768,128], index: 3, kind: input, shape index: {}]
  %s4 = inlined_call_operand.hbm [shape: bf16[128,128], index: 4, kind: input, shape index: {}]
  %s5 = inlined_call_operand.vmem [shape: bf16[128,256], index: 5, kind: input, shape index: {}]
  %s6 = inlined_call_operand.hbm [shape: f32[1,384], index: 6, kind: input, shape index: {}]
  %s7 = inlined_call_operand.vmem [shape: f32[128,128], index: 7, kind: input, shape index: {}]
  %s8 = inlined_call_operand.vmem [shape: f32[128,1], index: 8, kind: input, shape index: {}]
  %s9 = inlined_call_operand.<no memory space> [shape: f32[1], index: 9, kind: input, shape index: {}]
  %s10 = inlined_call_operand.vmem [shape: f32[2,1], index: 10, kind: output, shape index: {0}]
  %s11 = inlined_call_operand.hbm [shape: f32[2,128], index: 11, kind: output, shape index: {1}]
  %12 = xla_tuple %s10, %s11
  %s13 = sld [smem:[#allocation0]]
  $region74: #{forward.1} parent=0
    _
  %s15 = ssub.s32 1, %s13
  %s16 = scalar_select 0, %s15, %s13
  %17 = sst [smem:[#allocation2]] %s9
  $region1: #{forward.1} parent=0
    #allocation3 [shape = 'u8[16384]{0}', space=vmem, size = 0x4000, scoped, tag = 'input window, operand 2, single buffered']
    #allocation4 [shape = 's32[1]{0}', space=sflag, size = 0x4, scoped, tag = 'scoped memory for forward.1']
    #allocation5 [shape = 's32[1]{0}', space=sflag, size = 0x4, scoped, tag = 'scoped memory for forward.1']
    #allocation6 [shape = 'u8[196608]{0}', space=vmem, size = 0x30000, scoped, tag = 'input window, operand 3, single buffered']
    #allocation7 [shape = 's32[1]{0}', space=sflag, size = 0x4, scoped, tag = 'scoped memory for forward.1']
    #allocation8 [shape = 'u8[32768]{0}', space=vmem, size = 0x8000, scoped, tag = 'input window, operand 4, single buffered']
    #allocation9 [shape = 'u8[1536]{0}', space=vmem, size = 0x800, scoped, tag = 'input window, operand 6, single buffered']
    #allocation10 [shape = 's32[1]{0}', space=sflag, size = 0x4, scoped, tag = 'scoped memory for forward.1']
    #allocation11 [shape = 'u8[1024]{0}', space=vmem, size = 0x400, scoped, tag = 'output window, operand 1, single buffered']
    %18 = vsyncpa [#allocation4], 0
    %19 = vsyncpa [#allocation7], 0
    %20 = vsyncpa [#allocation10], 0
    %21 = vsyncpa [#allocation5], 0
    // Predicated region
    $region2: #{forward.1} parent=1 // pred_check
      _
    $region3: #{forward.1} parent=1 // pred_check_branch
      %23 = sbr.rel (0) target = $region5
    $region4: #{forward.1} parent=1 // pred_region
      _
    $region5: #{forward.1} parent=1 // pred_fallthru
      _
    // Predicated region
    $region6: #{forward.1} parent=1 // pred_check
      _
    $region7: #{forward.1} parent=1 // pred_check_branch
      %25 = sbr.rel (0) target = $region9
    $region8: #{forward.1} parent=1 // pred_region
      _
    $region9: #{forward.1} parent=1 // pred_fallthru
      _
    // Predicated region
    $region10: #{forward.1} parent=1 // pred_check
      _
    $region11: #{forward.1} parent=1 // pred_check_branch
      %27 = sbr.rel (0) target = $region13
    $region12: #{forward.1} parent=1 // pred_region
      %s29 = ssub.s32 512, 512
      %30 = vsyncadd [#allocation4], %s29
      %s31 = sshll.u32 [#allocation3], 4
      %s32 = int_to_ptr.vmem [resolvable:$true] %s31
      %37 = dma.hbm_to_vmem [thread:$0]  %s2, 512, %s32, [#allocation4], 64, 64, 4
    $region13: #{forward.1} parent=1 // pred_fallthru
      _
    // Predicated region
    $region14: #{forward.1} parent=1 // pred_check
      _
    $region15: #{forward.1} parent=1 // pred_check_branch
      %39 = sbr.rel (0) target = $region17
    $region16: #{forward.1} parent=1 // pred_region
      %s41 = ssub.s32 6144, 6144
      %42 = vsyncadd [#allocation7], %s41
      %s43 = sshll.u32 [#allocation6], 4
      %s44 = int_to_ptr.vmem [resolvable:$true] %s43
      %49 = dma.hbm_to_vmem [thread:$0]  %s3, 6144, %s44, [#allocation7], 64, 64, 4
    $region17: #{forward.1} parent=1 // pred_fallthru
      _
    // Predicated region
    $region18: #{forward.1} parent=1 // pred_check
      _
    $region19: #{forward.1} parent=1 // pred_check_branch
      %51 = sbr.rel (0) target = $region21
    $region20: #{forward.1} parent=1 // pred_region
      %s53 = ssub.s32 1024, 1024
      %54 = vsyncadd [#allocation7], %s53
      %s55 = sshll.u32 [#allocation8], 4
      %s56 = int_to_ptr.vmem [resolvable:$true] %s55
      %61 = dma.hbm_to_vmem [thread:$0]  %s4, 1024, %s56, [#allocation7], 64, 64, 4
    $region21: #{forward.1} parent=1 // pred_fallthru
      _
    // Predicated region
    $region22: #{forward.1} parent=1 // pred_check
      _
    $region23: #{forward.1} parent=1 // pred_check_branch
      %63 = sbr.rel (0) target = $region25
    $region24: #{forward.1} parent=1 // pred_region
      _
    $region25: #{forward.1} parent=1 // pred_fallthru
      _
    // Predicated region
    $region26: #{forward.1} parent=1 // pred_check
      _
    $region27: #{forward.1} parent=1 // pred_check_branch
      %65 = sbr.rel (0) target = $region29
    $region28: #{forward.1} parent=1 // pred_region
      %s67 = ssub.s32 48, 48
      %68 = vsyncadd [#allocation10], %s67
      %s70 = sshll.u32 [#allocation9], 4
      %s71 = int_to_ptr.vmem [resolvable:$true] %s70
      %73 = dma.hbm_to_vmem [thread:$0]  %s6, 48, %s71, [#allocation10]
    $region29: #{forward.1} parent=1 // pred_fallthru
      _
    // Predicated region
    $region30: #{forward.1} parent=1 // pred_check
      _
    $region31: #{forward.1} parent=1 // pred_check_branch
      %75 = sbr.rel (0) target = $region33
    $region32: #{forward.1} parent=1 // pred_region
      _
    $region33: #{forward.1} parent=1 // pred_fallthru
      _
    // Predicated region
    $region34: #{forward.1} parent=1 // pred_check
      _
    $region35: #{forward.1} parent=1 // pred_check_branch
      %77 = sbr.rel (0) target = $region37
    $region36: #{forward.1} parent=1 // pred_region
      _
    $region37: #{forward.1} parent=1 // pred_fallthru
      _
    // Predicated region
    $region38: #{forward.1} parent=1 // pred_check
      _
    $region39: #{forward.1} parent=1 // pred_check_branch
      %79 = sbr.rel (0) target = $region41
    $region40: #{forward.1} parent=1 // pred_region
      _
    $region41: #{forward.1} parent=1 // pred_fallthru
      _
    // Predicated region
    $region42: #{forward.1} parent=1 // pred_check
      _
    $region43: #{forward.1} parent=1 // pred_check_branch
      %81 = sbr.rel (0) target = $region45
    $region44: #{forward.1} parent=1 // pred_region
      %82 = dma.done [#allocation4], 512
    $region45: #{forward.1} parent=1 // pred_fallthru
      _
    // Predicated region
    $region46: #{forward.1} parent=1 // pred_check
      _
    $region47: #{forward.1} parent=1 // pred_check_branch
      %84 = sbr.rel (0) target = $region49
    $region48: #{forward.1} parent=1 // pred_region
      %85 = dma.done [#allocation7], 6144
    $region49: #{forward.1} parent=1 // pred_fallthru
      _
    // Predicated region
    $region50: #{forward.1} parent=1 // pred_check
      _
    $region51: #{forward.1} parent=1 // pred_check_branch
      %87 = sbr.rel (0) target = $region53
    $region52: #{forward.1} parent=1 // pred_region
      %88 = dma.done [#allocation7], 1024
    $region53: #{forward.1} parent=1 // pred_fallthru
      _
    // Predicated region
    $region54: #{forward.1} parent=1 // pred_check
      _
    $region55: #{forward.1} parent=1 // pred_check_branch
      %90 = sbr.rel (0) target = $region57
    $region56: #{forward.1} parent=1 // pred_region
      %91 = dma.done [#allocation10], 48
    $region57: #{forward.1} parent=1 // pred_fallthru
      _
    %v93 = vld [vmem:[%s0] sm:$0x3]
    %v94 = vpack.c.bf16 %v93, %v93
    %v95 = vld [vmem:[#allocation3] sm:$0xf]
    %v96 = vld [vmem:[#allocation3 + $0x4] sm:$0xf]
    %v97 = vld [vmem:[#allocation3 + $0x8] sm:$0xf]
    %v98 = vld [vmem:[#allocation3 + $0xc] sm:$0xf]
    %v99 = vld [vmem:[#allocation3 + $0x10] sm:$0xf]
    %v100 = vld [vmem:[#allocation3 + $0x14] sm:$0xf]
    %v101 = vld [vmem:[#allocation3 + $0x18] sm:$0xf]
    %v102 = vld [vmem:[#allocation3 + $0x1c] sm:$0xf]
    %v111 = vunpack.c.l.b16 %v95
    %v112 = vunpack.c.l.b16 %v96
    %v113 = vunpack.c.l.b16 %v97
    %v114 = vunpack.c.l.b16 %v98
    %v115 = vunpack.c.l.b16 %v99
    %v116 = vunpack.c.l.b16 %v100
    %v117 = vunpack.c.l.b16 %v101
    %v118 = vunpack.c.l.b16 %v102
    %v119 = vpack.c.b16 %v112, %v111
    %v120 = vpack.c.b16 %v114, %v113
    %v121 = vpack.c.b16 %v116, %v115
    %v122 = vpack.c.b16 %v118, %v117
    %vm127 = vcmask 523264
    %v129 = vsel %vm127, %v94, 0
    %131 = vmatprep.subr.bf16.mxu0 0
    %132 = vmatpush1.bf16.msra.mxu0 0
    %133 = vmatprep.subr.bf16.mxu0 0
    %134 = vmatpush1.bf16.msra.mxu0 0
    %135 = vmatprep.subr.bf16.mxu0 0
    %136 = vmatpush1.bf16.msra.mxu0 0
    %137 = vmatprep.subr.bf16.mxu0 0
    %138 = vmatpush1.bf16.msra.mxu0 0
    %139 = vmatprep.subr.bf16.mxu0 0
    %140 = vmatpush1.bf16.msra.mxu0 %v122
    %141 = vmatprep.subr.bf16.mxu0 0
    %142 = vmatpush1.bf16.msra.mxu0 %v121
    %143 = vmatprep.subr.bf16.mxu0 0
    %144 = vmatpush1.bf16.msra.mxu0 %v120
    %145 = vmatprep.subr.bf16.mxu0 0
    %146 = vmatpush1.bf16.msra.mxu0 %v119
    %147 = vmatprep.subr.bf16.mxu0 0
    %148 = vmatpush2.bf16.msra.mxu0 0
    %149 = vmatprep.subr.bf16.mxu0 0
    %150 = vmatpush2.bf16.msra.mxu0 0
    %151 = vmatprep.subr.bf16.mxu0 0
    %152 = vmatpush2.bf16.msra.mxu0 0
    %153 = vmatprep.subr.bf16.mxu0 0
    %154 = vmatpush2.bf16.msra.mxu0 0
    %155 = vmatprep.subr.bf16.mxu0 0
    %156 = vmatpush2.bf16.msra.mxu0 0
    %157 = vmatprep.subr.bf16.mxu0 0
    %158 = vmatpush2.bf16.msra.mxu0 0
    %159 = vmatprep.subr.bf16.mxu0 0
    %160 = vmatpush2.bf16.msra.mxu0 0
    %161 = vmatprep.subr.bf16.mxu0 0
    %162 = vmatpush2.bf16.msra.mxu0 0
    %163 = vmatprep.mubr.bf16.mxu0 0
    %164 = vmatmul.mubr.bf16.gmra.mxu0 %v129
    %v165 = vpop.f32.mrf.mxu0
    %v166 = vadd.f32 0.0, %v165
    %v167 = vpop.f32.mrf.mxu0
    %v168 = vpop.f32.mrf.mxu0
    %v169 = vpop.f32.mrf.mxu0
    %170 = vdwg.mxu0
    %v171 = vtanh.pop %v166
    %v172 = vld [vmem:[%s1] sm:$0xff]
    %v173 = vld [vmem:[%s1 + $0x8] sm:$0xf]
    %v176 = vcombine.high %v172, %v172
    %v178 = vunpack.c.l.s4 1983009808
    %v179 = vunpack.c.0.s8 %v178
    %v180 = vlaneseq
    %v181 = vshrl.u32 %v180, 7
    %v182 = vsub.s32 %v179, %v181
    %v183 = vrot.slane %v172, %v182
    %v185 = vunpack.c.l.s4 1983009808
    %v186 = vunpack.c.0.s8 %v185
    %v187 = vlaneseq
    %v188 = vshrl.u32 %v187, 7
    %v189 = vsub.s32 %v186, %v188
    %v190 = vrot.slane %v176, %v189
    %v191 = vcombine.high %v183, %v183
    %v192 = vcombine.high %v190, %v190
    %v194 = vunpack.c.l.s4 1983009808
    %v195 = vunpack.c.0.s8 %v194
    %v196 = vlaneseq
    %v197 = vshrl.u32 %v196, 7
    %v198 = vsub.s32 %v195, %v197
    %v199 = vrot.slane %v173, %v198
    %v200 = vcombine.high %v199, %v199
    %v207 = vpack.c.bf16 %v183, %v183
    %v208 = vpack.c.bf16 %v191, %v191
    %v209 = vpack.c.bf16 %v190, %v190
    %v210 = vpack.c.bf16 %v192, %v192
    %v211 = vpack.c.bf16 %v199, %v199
    %v212 = vpack.c.bf16 %v200, %v200
    %v213 = vld [vmem:[#allocation6] sm:$0xf]
    %v214 = vld [vmem:[#allocation6 + $0x4] sm:$0xf]
    %v215 = vld [vmem:[#allocation6 + $0x8] sm:$0xf]
    %v216 = vld [vmem:[#allocation6 + $0xc] sm:$0xf]
    %v217 = vld [vmem:[#allocation6 + $0x10] sm:$0xf]
    %v218 = vld [vmem:[#allocation6 + $0x14] sm:$0xf]
    %v219 = vld [vmem:[#allocation6 + $0x18] sm:$0xf]
    %v220 = vld [vmem:[#allocation6 + $0x1c] sm:$0xf]
    %v221 = vld [vmem:[#allocation6 + $0x20] sm:$0xf]
    %v222 = vld [vmem:[#allocation6 + $0x24] sm:$0xf]
    %v223 = vld [vmem:[#allocation6 + $0x28] sm:$0xf]
    %v224 = vld [vmem:[#allocation6 + $0x2c] sm:$0xf]
    %v225 = vld [vmem:[#allocation6 + $0x30] sm:$0xf]
    %v226 = vld [vmem:[#allocation6 + $0x34] sm:$0xf]
    %v227 = vld [vmem:[#allocation6 + $0x38] sm:$0xf]
    %v228 = vld [vmem:[#allocation6 + $0x3c] sm:$0xf]
    %v229 = vld [vmem:[#allocation6 + $0x40] sm:$0xf]
    %v230 = vld [vmem:[#allocation6 + $0x44] sm:$0xf]
    %v231 = vld [vmem:[#allocation6 + $0x48] sm:$0xf]
    %v232 = vld [vmem:[#allocation6 + $0x4c] sm:$0xf]
    %v233 = vld [vmem:[#allocation6 + $0x50] sm:$0xf]
    %v234 = vld [vmem:[#allocation6 + $0x54] sm:$0xf]
    %v235 = vld [vmem:[#allocation6 + $0x58] sm:$0xf]
    %v236 = vld [vmem:[#allocation6 + $0x5c] sm:$0xf]
    %v237 = vld [vmem:[#allocation6 + $0x60] sm:$0xf]
    %v238 = vld [vmem:[#allocation6 + $0x64] sm:$0xf]
    %v239 = vld [vmem:[#allocation6 + $0x68] sm:$0xf]
    %v240 = vld [vmem:[#allocation6 + $0x6c] sm:$0xf]
    %v241 = vld [vmem:[#allocation6 + $0x70] sm:$0xf]
    %v242 = vld [vmem:[#allocation6 + $0x74] sm:$0xf]
    %v243 = vld [vmem:[#allocation6 + $0x78] sm:$0xf]
    %v244 = vld [vmem:[#allocation6 + $0x7c] sm:$0xf]
    %v245 = vld [vmem:[#allocation6 + $0x80] sm:$0xf]
    %v246 = vld [vmem:[#allocation6 + $0x84] sm:$0xf]
    %v247 = vld [vmem:[#allocation6 + $0x88] sm:$0xf]
    %v248 = vld [vmem:[#allocation6 + $0x8c] sm:$0xf]
    %v249 = vld [vmem:[#allocation6 + $0x90] sm:$0xf]
    %v250 = vld [vmem:[#allocation6 + $0x94] sm:$0xf]
    %v251 = vld [vmem:[#allocation6 + $0x98] sm:$0xf]
    %v252 = vld [vmem:[#allocation6 + $0x9c] sm:$0xf]
    %v253 = vld [vmem:[#allocation6 + $0xa0] sm:$0xf]
    %v254 = vld [vmem:[#allocation6 + $0xa4] sm:$0xf]
    %v255 = vld [vmem:[#allocation6 + $0xa8] sm:$0xf]
    %v256 = vld [vmem:[#allocation6 + $0xac] sm:$0xf]
    %v257 = vld [vmem:[#allocation6 + $0xb0] sm:$0xf]
    %v258 = vld [vmem:[#allocation6 + $0xb4] sm:$0xf]
    %v259 = vld [vmem:[#allocation6 + $0xb8] sm:$0xf]
    %v260 = vld [vmem:[#allocation6 + $0xbc] sm:$0xf]
    %v261 = vld [vmem:[#allocation6 + $0xc0] sm:$0xf]
    %v262 = vld [vmem:[#allocation6 + $0xc4] sm:$0xf]
    %v263 = vld [vmem:[#allocation6 + $0xc8] sm:$0xf]
    %v264 = vld [vmem:[#allocation6 + $0xcc] sm:$0xf]
    %v265 = vld [vmem:[#allocation6 + $0xd0] sm:$0xf]
    %v266 = vld [vmem:[#allocation6 + $0xd4] sm:$0xf]
    %v267 = vld [vmem:[#allocation6 + $0xd8] sm:$0xf]
    %v268 = vld [vmem:[#allocation6 + $0xdc] sm:$0xf]
    %v269 = vld [vmem:[#allocation6 + $0xe0] sm:$0xf]
    %v270 = vld [vmem:[#allocation6 + $0xe4] sm:$0xf]
    %v271 = vld [vmem:[#allocation6 + $0xe8] sm:$0xf]
    %v272 = vld [vmem:[#allocation6 + $0xec] sm:$0xf]
    %v273 = vld [vmem:[#allocation6 + $0xf0] sm:$0xf]
    %v274 = vld [vmem:[#allocation6 + $0xf4] sm:$0xf]
    %v275 = vld [vmem:[#allocation6 + $0xf8] sm:$0xf]
    %v276 = vld [vmem:[#allocation6 + $0xfc] sm:$0xf]
    %v277 = vld [vmem:[#allocation6 + $0x100] sm:$0xf]
    %v278 = vld [vmem:[#allocation6 + $0x104] sm:$0xf]
    %v279 = vld [vmem:[#allocation6 + $0x108] sm:$0xf]
    %v280 = vld [vmem:[#allocation6 + $0x10c] sm:$0xf]
    %v281 = vld [vmem:[#allocation6 + $0x110] sm:$0xf]
    %v282 = vld [vmem:[#allocation6 + $0x114] sm:$0xf]
    %v283 = vld [vmem:[#allocation6 + $0x118] sm:$0xf]
    %v284 = vld [vmem:[#allocation6 + $0x11c] sm:$0xf]
    %v285 = vld [vmem:[#allocation6 + $0x120] sm:$0xf]
    %v286 = vld [vmem:[#allocation6 + $0x124] sm:$0xf]
    %v287 = vld [vmem:[#allocation6 + $0x128] sm:$0xf]
    %v288 = vld [vmem:[#allocation6 + $0x12c] sm:$0xf]
    %v289 = vld [vmem:[#allocation6 + $0x130] sm:$0xf]
    %v290 = vld [vmem:[#allocation6 + $0x134] sm:$0xf]
    %v291 = vld [vmem:[#allocation6 + $0x138] sm:$0xf]
    %v292 = vld [vmem:[#allocation6 + $0x13c] sm:$0xf]
    %v293 = vld [vmem:[#allocation6 + $0x140] sm:$0xf]
    %v294 = vld [vmem:[#allocation6 + $0x144] sm:$0xf]
    %v295 = vld [vmem:[#allocation6 + $0x148] sm:$0xf]
    %v296 = vld [vmem:[#allocation6 + $0x14c] sm:$0xf]
    %v297 = vld [vmem:[#allocation6 + $0x150] sm:$0xf]
    %v298 = vld [vmem:[#allocation6 + $0x154] sm:$0xf]
    %v299 = vld [vmem:[#allocation6 + $0x158] sm:$0xf]
    %v300 = vld [vmem:[#allocation6 + $0x15c] sm:$0xf]
    %v301 = vld [vmem:[#allocation6 + $0x160] sm:$0xf]
    %v302 = vld [vmem:[#allocation6 + $0x164] sm:$0xf]
    %v303 = vld [vmem:[#allocation6 + $0x168] sm:$0xf]
    %v304 = vld [vmem:[#allocation6 + $0x16c] sm:$0xf]
    %v305 = vld [vmem:[#allocation6 + $0x170] sm:$0xf]
    %v306 = vld [vmem:[#allocation6 + $0x174] sm:$0xf]
    %v307 = vld [vmem:[#allocation6 + $0x178] sm:$0xf]
    %v308 = vld [vmem:[#allocation6 + $0x17c] sm:$0xf]
    %v405 = vunpack.c.l.b16 %v213
    %v406 = vunpack.c.l.b16 %v214
    %v407 = vunpack.c.l.b16 %v215
    %v408 = vunpack.c.l.b16 %v216
    %v409 = vunpack.c.l.b16 %v217
    %v410 = vunpack.c.l.b16 %v218
    %v411 = vunpack.c.l.b16 %v219
    %v412 = vunpack.c.l.b16 %v220
    %v413 = vunpack.c.l.b16 %v221
    %v414 = vunpack.c.l.b16 %v222
    %v415 = vunpack.c.l.b16 %v223
    %v416 = vunpack.c.l.b16 %v224
    %v417 = vunpack.c.l.b16 %v225
    %v418 = vunpack.c.l.b16 %v226
    %v419 = vunpack.c.l.b16 %v227
    %v420 = vunpack.c.l.b16 %v228
    %v421 = vunpack.c.l.b16 %v229
    %v422 = vunpack.c.l.b16 %v230
    %v423 = vunpack.c.l.b16 %v231
    %v424 = vunpack.c.l.b16 %v232
    %v425 = vunpack.c.l.b16 %v233
    %v426 = vunpack.c.l.b16 %v234
    %v427 = vunpack.c.l.b16 %v235
    %v428 = vunpack.c.l.b16 %v236
    %v429 = vunpack.c.l.b16 %v237
    %v430 = vunpack.c.l.b16 %v238
    %v431 = vunpack.c.l.b16 %v239
    %v432 = vunpack.c.l.b16 %v240
    %v433 = vunpack.c.l.b16 %v241
    %v434 = vunpack.c.l.b16 %v242
    %v435 = vunpack.c.l.b16 %v243
    %v436 = vunpack.c.l.b16 %v244
    %v437 = vunpack.c.l.b16 %v245
    %v438 = vunpack.c.l.b16 %v246
    %v439 = vunpack.c.l.b16 %v247
    %v440 = vunpack.c.l.b16 %v248
    %v441 = vunpack.c.l.b16 %v249
    %v442 = vunpack.c.l.b16 %v250
    %v443 = vunpack.c.l.b16 %v251
    %v444 = vunpack.c.l.b16 %v252
    %v445 = vunpack.c.l.b16 %v253
    %v446 = vunpack.c.l.b16 %v254
    %v447 = vunpack.c.l.b16 %v255
    %v448 = vunpack.c.l.b16 %v256
    %v449 = vunpack.c.l.b16 %v257
    %v450 = vunpack.c.l.b16 %v258
    %v451 = vunpack.c.l.b16 %v259
    %v452 = vunpack.c.l.b16 %v260
    %v453 = vunpack.c.l.b16 %v261
    %v454 = vunpack.c.l.b16 %v262
    %v455 = vunpack.c.l.b16 %v263
    %v456 = vunpack.c.l.b16 %v264
    %v457 = vunpack.c.l.b16 %v265
    %v458 = vunpack.c.l.b16 %v266
    %v459 = vunpack.c.l.b16 %v267
    %v460 = vunpack.c.l.b16 %v268
    %v461 = vunpack.c.l.b16 %v269
    %v462 = vunpack.c.l.b16 %v270
    %v463 = vunpack.c.l.b16 %v271
    %v464 = vunpack.c.l.b16 %v272
    %v465 = vunpack.c.l.b16 %v273
    %v466 = vunpack.c.l.b16 %v274
    %v467 = vunpack.c.l.b16 %v275
    %v468 = vunpack.c.l.b16 %v276
    %v469 = vunpack.c.l.b16 %v277
    %v470 = vunpack.c.l.b16 %v278
    %v471 = vunpack.c.l.b16 %v279
    %v472 = vunpack.c.l.b16 %v280
    %v473 = vunpack.c.l.b16 %v281
    %v474 = vunpack.c.l.b16 %v282
    %v475 = vunpack.c.l.b16 %v283
    %v476 = vunpack.c.l.b16 %v284
    %v477 = vunpack.c.l.b16 %v285
    %v478 = vunpack.c.l.b16 %v286
    %v479 = vunpack.c.l.b16 %v287
    %v480 = vunpack.c.l.b16 %v288
    %v481 = vunpack.c.l.b16 %v289
    %v482 = vunpack.c.l.b16 %v290
    %v483 = vunpack.c.l.b16 %v291
    %v484 = vunpack.c.l.b16 %v292
    %v485 = vunpack.c.l.b16 %v293
    %v486 = vunpack.c.l.b16 %v294
    %v487 = vunpack.c.l.b16 %v295
    %v488 = vunpack.c.l.b16 %v296
    %v489 = vunpack.c.l.b16 %v297
    %v490 = vunpack.c.l.b16 %v298
    %v491 = vunpack.c.l.b16 %v299
    %v492 = vunpack.c.l.b16 %v300
    %v493 = vunpack.c.l.b16 %v301
    %v494 = vunpack.c.l.b16 %v302
    %v495 = vunpack.c.l.b16 %v303
    %v496 = vunpack.c.l.b16 %v304
    %v497 = vunpack.c.l.b16 %v305
    %v498 = vunpack.c.l.b16 %v306
    %v499 = vunpack.c.l.b16 %v307
    %v500 = vunpack.c.l.b16 %v308
    %v501 = vpack.c.b16 %v406, %v405
    %v502 = vpack.c.b16 %v408, %v407
    %v503 = vpack.c.b16 %v410, %v409
    %v504 = vpack.c.b16 %v412, %v411
    %v505 = vpack.c.b16 %v414, %v413
    %v506 = vpack.c.b16 %v416, %v415
    %v507 = vpack.c.b16 %v418, %v417
    %v508 = vpack.c.b16 %v420, %v419
    %v509 = vpack.c.b16 %v422, %v421
    %v510 = vpack.c.b16 %v424, %v423
    %v511 = vpack.c.b16 %v426, %v425
    %v512 = vpack.c.b16 %v428, %v427
    %v513 = vpack.c.b16 %v430, %v429
    %v514 = vpack.c.b16 %v432, %v431
    %v515 = vpack.c.b16 %v434, %v433
    %v516 = vpack.c.b16 %v436, %v435
    %v517 = vpack.c.b16 %v438, %v437
    %v518 = vpack.c.b16 %v440, %v439
    %v519 = vpack.c.b16 %v442, %v441
    %v520 = vpack.c.b16 %v444, %v443
    %v521 = vpack.c.b16 %v446, %v445
    %v522 = vpack.c.b16 %v448, %v447
    %v523 = vpack.c.b16 %v450, %v449
    %v524 = vpack.c.b16 %v452, %v451
    %v525 = vpack.c.b16 %v454, %v453
    %v526 = vpack.c.b16 %v456, %v455
    %v527 = vpack.c.b16 %v458, %v457
    %v528 = vpack.c.b16 %v460, %v459
    %v529 = vpack.c.b16 %v462, %v461
    %v530 = vpack.c.b16 %v464, %v463
    %v531 = vpack.c.b16 %v466, %v465
    %v532 = vpack.c.b16 %v468, %v467
    %v533 = vpack.c.b16 %v470, %v469
    %v534 = vpack.c.b16 %v472, %v471
    %v535 = vpack.c.b16 %v474, %v473
    %v536 = vpack.c.b16 %v476, %v475
    %v537 = vpack.c.b16 %v478, %v477
    %v538 = vpack.c.b16 %v480, %v479
    %v539 = vpack.c.b16 %v482, %v481
    %v540 = vpack.c.b16 %v484, %v483
    %v541 = vpack.c.b16 %v486, %v485
    %v542 = vpack.c.b16 %v488, %v487
    %v543 = vpack.c.b16 %v490, %v489
    %v544 = vpack.c.b16 %v492, %v491
    %v545 = vpack.c.b16 %v494, %v493
    %v546 = vpack.c.b16 %v496, %v495
    %v547 = vpack.c.b16 %v498, %v497
    %v548 = vpack.c.b16 %v500, %v499
    %597 = vmatprep.subr.bf16.mxu0 0
    %598 = vmatpush1.bf16.msra.mxu0 %v508
    %599 = vmatprep.subr.bf16.mxu0 0
    %600 = vmatpush1.bf16.msra.mxu0 %v507
    %601 = vmatprep.subr.bf16.mxu0 0
    %602 = vmatpush1.bf16.msra.mxu0 %v506
    %603 = vmatprep.subr.bf16.mxu0 0
    %604 = vmatpush1.bf16.msra.mxu0 %v505
    %605 = vmatprep.subr.bf16.mxu0 0
    %606 = vmatpush1.bf16.msra.mxu0 %v504
    %607 = vmatprep.subr.bf16.mxu0 0
    %608 = vmatpush1.bf16.msra.mxu0 %v503
    %609 = vmatprep.subr.bf16.mxu0 0
    %610 = vmatpush1.bf16.msra.mxu0 %v502
    %611 = vmatprep.subr.bf16.mxu0 0
    %612 = vmatpush1.bf16.msra.mxu0 %v501
    %613 = vmatprep.subr.bf16.mxu0 0
    %614 = vmatpush2.bf16.msra.mxu0 %v516
    %615 = vmatprep.subr.bf16.mxu0 0
    %616 = vmatpush2.bf16.msra.mxu0 %v515
    %617 = vmatprep.subr.bf16.mxu0 0
    %618 = vmatpush2.bf16.msra.mxu0 %v514
    %619 = vmatprep.subr.bf16.mxu0 0
    %620 = vmatpush2.bf16.msra.mxu0 %v513
    %621 = vmatprep.subr.bf16.mxu0 0
    %622 = vmatpush2.bf16.msra.mxu0 %v512
    %623 = vmatprep.subr.bf16.mxu0 0
    %624 = vmatpush2.bf16.msra.mxu0 %v511
    %625 = vmatprep.subr.bf16.mxu0 0
    %626 = vmatpush2.bf16.msra.mxu0 %v510
    %627 = vmatprep.subr.bf16.mxu0 0
    %628 = vmatpush2.bf16.msra.mxu0 %v509
    %629 = vmatprep.mubr.bf16.mxu0 %v208
    %630 = vmatmul.mubr.bf16.gmra.mxu0 %v207
    %v631 = vpop.f32.mrf.mxu0
    %v632 = vadd.f32 0.0, %v631
    %v633 = vpop.f32.mrf.mxu0
    %v634 = vpop.f32.mrf.mxu0
    %v635 = vpop.f32.mrf.mxu0
    %636 = vdwg.mxu0
    %637 = vmatprep.subr.bf16.mxu0 0
    %638 = vmatpush1.bf16.msra.mxu0 %v524
    %639 = vmatprep.subr.bf16.mxu0 0
    %640 = vmatpush1.bf16.msra.mxu0 %v523
    %641 = vmatprep.subr.bf16.mxu0 0
    %642 = vmatpush1.bf16.msra.mxu0 %v522
    %643 = vmatprep.subr.bf16.mxu0 0
    %644 = vmatpush1.bf16.msra.mxu0 %v521
    %645 = vmatprep.subr.bf16.mxu0 0
    %646 = vmatpush1.bf16.msra.mxu0 %v520
    %647 = vmatprep.subr.bf16.mxu0 0
    %648 = vmatpush1.bf16.msra.mxu0 %v519
    %649 = vmatprep.subr.bf16.mxu0 0
    %650 = vmatpush1.bf16.msra.mxu0 %v518
    %651 = vmatprep.subr.bf16.mxu0 0
    %652 = vmatpush1.bf16.msra.mxu0 %v517
    %653 = vmatprep.subr.bf16.mxu0 0
    %654 = vmatpush2.bf16.msra.mxu0 %v532
    %655 = vmatprep.subr.bf16.mxu0 0
    %656 = vmatpush2.bf16.msra.mxu0 %v531
    %657 = vmatprep.subr.bf16.mxu0 0
    %658 = vmatpush2.bf16.msra.mxu0 %v530
    %659 = vmatprep.subr.bf16.mxu0 0
    %660 = vmatpush2.bf16.msra.mxu0 %v529
    %661 = vmatprep.subr.bf16.mxu0 0
    %662 = vmatpush2.bf16.msra.mxu0 %v528
    %663 = vmatprep.subr.bf16.mxu0 0
    %664 = vmatpush2.bf16.msra.mxu0 %v527
    %665 = vmatprep.subr.bf16.mxu0 0
    %666 = vmatpush2.bf16.msra.mxu0 %v526
    %667 = vmatprep.subr.bf16.mxu0 0
    %668 = vmatpush2.bf16.msra.mxu0 %v525
    %669 = vmatprep.mubr.bf16.mxu0 %v210
    %670 = vmatmul.mubr.bf16.gmra.mxu0 %v209
    %v671 = vpop.f32.mrf.mxu0
    %v672 = vadd.f32 %v632, %v671
    %v673 = vpop.f32.mrf.mxu0
    %v674 = vpop.f32.mrf.mxu0
    %v675 = vpop.f32.mrf.mxu0
    %676 = vdwg.mxu0
    %677 = vmatprep.subr.bf16.mxu0 0
    %678 = vmatpush1.bf16.msra.mxu0 %v540
    %679 = vmatprep.subr.bf16.mxu0 0
    %680 = vmatpush1.bf16.msra.mxu0 %v539
    %681 = vmatprep.subr.bf16.mxu0 0
    %682 = vmatpush1.bf16.msra.mxu0 %v538
    %683 = vmatprep.subr.bf16.mxu0 0
    %684 = vmatpush1.bf16.msra.mxu0 %v537
    %685 = vmatprep.subr.bf16.mxu0 0
    %686 = vmatpush1.bf16.msra.mxu0 %v536
    %687 = vmatprep.subr.bf16.mxu0 0
    %688 = vmatpush1.bf16.msra.mxu0 %v535
    %689 = vmatprep.subr.bf16.mxu0 0
    %690 = vmatpush1.bf16.msra.mxu0 %v534
    %691 = vmatprep.subr.bf16.mxu0 0
    %692 = vmatpush1.bf16.msra.mxu0 %v533
    %693 = vmatprep.subr.bf16.mxu0 0
    %694 = vmatpush2.bf16.msra.mxu0 %v548
    %695 = vmatprep.subr.bf16.mxu0 0
    %696 = vmatpush2.bf16.msra.mxu0 %v547
    %697 = vmatprep.subr.bf16.mxu0 0
    %698 = vmatpush2.bf16.msra.mxu0 %v546
    %699 = vmatprep.subr.bf16.mxu0 0
    %700 = vmatpush2.bf16.msra.mxu0 %v545
    %701 = vmatprep.subr.bf16.mxu0 0
    %702 = vmatpush2.bf16.msra.mxu0 %v544
    %703 = vmatprep.subr.bf16.mxu0 0
    %704 = vmatpush2.bf16.msra.mxu0 %v543
    %705 = vmatprep.subr.bf16.mxu0 0
    %706 = vmatpush2.bf16.msra.mxu0 %v542
    %707 = vmatprep.subr.bf16.mxu0 0
    %708 = vmatpush2.bf16.msra.mxu0 %v541
    %709 = vmatprep.mubr.bf16.mxu0 %v212
    %710 = vmatmul.mubr.bf16.gmra.mxu0 %v211
    %v711 = vpop.f32.mrf.mxu0
    %v712 = vadd.f32 %v672, %v711
    %v713 = vpop.f32.mrf.mxu0
    %v714 = vpop.f32.mrf.mxu0
    %v715 = vpop.f32.mrf.mxu0
    %716 = vdwg.mxu0
    %v717 = vtanh.pop %v712
    %v718 = vpack.c.bf16 %v171, %v171
    %v719 = vld [vmem:[#allocation8] sm:$0xf]
    %v720 = vld [vmem:[#allocation8 + $0x4] sm:$0xf]
    %v721 = vld [vmem:[#allocation8 + $0x8] sm:$0xf]
    %v722 = vld [vmem:[#allocation8 + $0xc] sm:$0xf]
    %v723 = vld [vmem:[#allocation8 + $0x10] sm:$0xf]
    %v724 = vld [vmem:[#allocation8 + $0x14] sm:$0xf]
    %v725 = vld [vmem:[#allocation8 + $0x18] sm:$0xf]
    %v726 = vld [vmem:[#allocation8 + $0x1c] sm:$0xf]
    %v727 = vld [vmem:[#allocation8 + $0x20] sm:$0xf]
    %v728 = vld [vmem:[#allocation8 + $0x24] sm:$0xf]
    %v729 = vld [vmem:[#allocation8 + $0x28] sm:$0xf]
    %v730 = vld [vmem:[#allocation8 + $0x2c] sm:$0xf]
    %v731 = vld [vmem:[#allocation8 + $0x30] sm:$0xf]
    %v732 = vld [vmem:[#allocation8 + $0x34] sm:$0xf]
    %v733 = vld [vmem:[#allocation8 + $0x38] sm:$0xf]
    %v734 = vld [vmem:[#allocation8 + $0x3c] sm:$0xf]
    %v735 = vld [vmem:[#allocation9] sm:$0x1]
    %v737 = vlaneseq
    %v738 = vshrl.u32 %v737, 7
    %v739 = vsub.s32 0, %v738
    %v740 = vrot.slane %v735, %v739
    %v758 = vunpack.c.l.b16 %v719
    %v759 = vunpack.c.l.b16 %v720
    %v760 = vunpack.c.l.b16 %v721
    %v761 = vunpack.c.l.b16 %v722
    %v762 = vunpack.c.l.b16 %v723
    %v763 = vunpack.c.l.b16 %v724
    %v764 = vunpack.c.l.b16 %v725
    %v765 = vunpack.c.l.b16 %v726
    %v766 = vunpack.c.l.b16 %v727
    %v767 = vunpack.c.l.b16 %v728
    %v768 = vunpack.c.l.b16 %v729
    %v769 = vunpack.c.l.b16 %v730
    %v770 = vunpack.c.l.b16 %v731
    %v771 = vunpack.c.l.b16 %v732
    %v772 = vunpack.c.l.b16 %v733
    %v773 = vunpack.c.l.b16 %v734
    %v774 = vpack.c.b16 %v759, %v758
    %v775 = vpack.c.b16 %v761, %v760
    %v776 = vpack.c.b16 %v763, %v762
    %v777 = vpack.c.b16 %v765, %v764
    %v778 = vpack.c.b16 %v767, %v766
    %v779 = vpack.c.b16 %v769, %v768
    %v780 = vpack.c.b16 %v771, %v770
    %v781 = vpack.c.b16 %v773, %v772
    %790 = vmatprep.subr.bf16.mxu0 0
    %791 = vmatpush1.bf16.msra.mxu0 %v781
    %792 = vmatprep.subr.bf16.mxu0 0
    %793 = vmatpush1.bf16.msra.mxu0 %v780
    %794 = vmatprep.subr.bf16.mxu0 0
    %795 = vmatpush1.bf16.msra.mxu0 %v779
    %796 = vmatprep.subr.bf16.mxu0 0
    %797 = vmatpush1.bf16.msra.mxu0 %v778
    %798 = vmatprep.subr.bf16.mxu0 0
    %799 = vmatpush1.bf16.msra.mxu0 %v777
    %800 = vmatprep.subr.bf16.mxu0 0
    %801 = vmatpush1.bf16.msra.mxu0 %v776
    %802 = vmatprep.subr.bf16.mxu0 0
    %803 = vmatpush1.bf16.msra.mxu0 %v775
    %804 = vmatprep.subr.bf16.mxu0 0
    %805 = vmatpush1.bf16.msra.mxu0 %v774
    %806 = vmatprep.subr.bf16.mxu0 0
    %807 = vmatpush2.bf16.msra.mxu0 0
    %808 = vmatprep.subr.bf16.mxu0 0
    %809 = vmatpush2.bf16.msra.mxu0 0
    %810 = vmatprep.subr.bf16.mxu0 0
    %811 = vmatpush2.bf16.msra.mxu0 0
    %812 = vmatprep.subr.bf16.mxu0 0
    %813 = vmatpush2.bf16.msra.mxu0 0
    %814 = vmatprep.subr.bf16.mxu0 0
    %815 = vmatpush2.bf16.msra.mxu0 0
    %816 = vmatprep.subr.bf16.mxu0 0
    %817 = vmatpush2.bf16.msra.mxu0 0
    %818 = vmatprep.subr.bf16.mxu0 0
    %819 = vmatpush2.bf16.msra.mxu0 0
    %820 = vmatprep.subr.bf16.mxu0 0
    %821 = vmatpush2.bf16.msra.mxu0 0
    %822 = vmatprep.mubr.bf16.mxu0 0
    %823 = vmatmul.mubr.bf16.gmra.mxu0 %v718
    %v824 = vpop.f32.mrf.mxu0
    %v825 = vadd.f32 %v740, %v824
    %v826 = vpop.f32.mrf.mxu0
    %v827 = vpop.f32.mrf.mxu0
    %v828 = vpop.f32.mrf.mxu0
    %829 = vdwg.mxu0
    %v830 = vpack.c.bf16 %v717, %v717
    %v831 = vld [vmem:[%s5] sm:$0xff]
    %v832 = vld [vmem:[%s5 + $0x8] sm:$0xff]
    %v833 = vld [vmem:[%s5 + $0x10] sm:$0xff]
    %v834 = vld [vmem:[%s5 + $0x18] sm:$0xff]
    %v835 = vld [vmem:[%s5 + $0x20] sm:$0xff]
    %v836 = vld [vmem:[%s5 + $0x28] sm:$0xff]
    %v837 = vld [vmem:[%s5 + $0x30] sm:$0xff]
    %v838 = vld [vmem:[%s5 + $0x38] sm:$0xff]
    %v839 = vld [vmem:[%s5 + $0x40] sm:$0xff]
    %v840 = vld [vmem:[%s5 + $0x48] sm:$0xff]
    %v841 = vld [vmem:[%s5 + $0x50] sm:$0xff]
    %v842 = vld [vmem:[%s5 + $0x58] sm:$0xff]
    %v843 = vld [vmem:[%s5 + $0x60] sm:$0xff]
    %v844 = vld [vmem:[%s5 + $0x68] sm:$0xff]
    %v845 = vld [vmem:[%s5 + $0x70] sm:$0xff]
    %v846 = vld [vmem:[%s5 + $0x78] sm:$0xff]
    %v847 = vld [vmem:[#allocation9 + $0x1] sm:$0x3]
    %v849 = vlaneseq
    %v850 = vshrl.u32 %v849, 7
    %v851 = vsub.s32 0, %v850
    %v852 = vrot.slane %v847, %v851
    %v853 = vlaneseq
    %v854 = vshrl.u32 %v853, 7
    %v855 = vsub.s32 1, %v854
    %v856 = vrot.slane %v847, %v855
    %v875 = vunpack.c.l.b16 %v831
    %v876 = vunpack.c.h.b16 %v831
    %v877 = vunpack.c.l.b16 %v832
    %v878 = vunpack.c.h.b16 %v832
    %v879 = vunpack.c.l.b16 %v833
    %v880 = vunpack.c.h.b16 %v833
    %v881 = vunpack.c.l.b16 %v834
    %v882 = vunpack.c.h.b16 %v834
    %v883 = vunpack.c.l.b16 %v835
    %v884 = vunpack.c.h.b16 %v835
    %v885 = vunpack.c.l.b16 %v836
    %v886 = vunpack.c.h.b16 %v836
    %v887 = vunpack.c.l.b16 %v837
    %v888 = vunpack.c.h.b16 %v837
    %v889 = vunpack.c.l.b16 %v838
    %v890 = vunpack.c.h.b16 %v838
    %v891 = vunpack.c.l.b16 %v839
    %v892 = vunpack.c.h.b16 %v839
    %v893 = vunpack.c.l.b16 %v840
    %v894 = vunpack.c.h.b16 %v840
    %v895 = vunpack.c.l.b16 %v841
    %v896 = vunpack.c.h.b16 %v841
    %v897 = vunpack.c.l.b16 %v842
    %v898 = vunpack.c.h.b16 %v842
    %v899 = vunpack.c.l.b16 %v843
    %v900 = vunpack.c.h.b16 %v843
    %v901 = vunpack.c.l.b16 %v844
    %v902 = vunpack.c.h.b16 %v844
    %v903 = vunpack.c.l.b16 %v845
    %v904 = vunpack.c.h.b16 %v845
    %v905 = vunpack.c.l.b16 %v846
    %v906 = vunpack.c.h.b16 %v846
    %v907 = vpack.c.b16 %v877, %v875
    %v908 = vpack.c.b16 %v878, %v876
    %v909 = vpack.c.b16 %v881, %v879
    %v910 = vpack.c.b16 %v882, %v880
    %v911 = vpack.c.b16 %v885, %v883
    %v912 = vpack.c.b16 %v886, %v884
    %v913 = vpack.c.b16 %v889, %v887
    %v914 = vpack.c.b16 %v890, %v888
    %v915 = vpack.c.b16 %v893, %v891
    %v916 = vpack.c.b16 %v894, %v892
    %v917 = vpack.c.b16 %v897, %v895
    %v918 = vpack.c.b16 %v898, %v896
    %v919 = vpack.c.b16 %v901, %v899
    %v920 = vpack.c.b16 %v902, %v900
    %v921 = vpack.c.b16 %v905, %v903
    %v922 = vpack.c.b16 %v906, %v904
    %939 = vmatprep.subr.bf16.mxu0 %v922
    %940 = vmatpush1.bf16.msra.mxu0 %v921
    %941 = vmatprep.subr.bf16.mxu0 %v920
    %942 = vmatpush1.bf16.msra.mxu0 %v919
    %943 = vmatprep.subr.bf16.mxu0 %v918
    %944 = vmatpush1.bf16.msra.mxu0 %v917
    %945 = vmatprep.subr.bf16.mxu0 %v916
    %946 = vmatpush1.bf16.msra.mxu0 %v915
    %947 = vmatprep.subr.bf16.mxu0 %v914
    %948 = vmatpush1.bf16.msra.mxu0 %v913
    %949 = vmatprep.subr.bf16.mxu0 %v912
    %950 = vmatpush1.bf16.msra.mxu0 %v911
    %951 = vmatprep.subr.bf16.mxu0 %v910
    %952 = vmatpush1.bf16.msra.mxu0 %v909
    %953 = vmatprep.subr.bf16.mxu0 %v908
    %954 = vmatpush1.bf16.msra.mxu0 %v907
    %955 = vmatprep.subr.bf16.mxu0 0
    %956 = vmatpush2.bf16.msra.mxu0 0
    %957 = vmatprep.subr.bf16.mxu0 0
    %958 = vmatpush2.bf16.msra.mxu0 0
    %959 = vmatprep.subr.bf16.mxu0 0
    %960 = vmatpush2.bf16.msra.mxu0 0
    %961 = vmatprep.subr.bf16.mxu0 0
    %962 = vmatpush2.bf16.msra.mxu0 0
    %963 = vmatprep.subr.bf16.mxu0 0
    %964 = vmatpush2.bf16.msra.mxu0 0
    %965 = vmatprep.subr.bf16.mxu0 0
    %966 = vmatpush2.bf16.msra.mxu0 0
    %967 = vmatprep.subr.bf16.mxu0 0
    %968 = vmatpush2.bf16.msra.mxu0 0
    %969 = vmatprep.subr.bf16.mxu0 0
    %970 = vmatpush2.bf16.msra.mxu0 0
    %971 = vmatprep.mubr.bf16.mxu0 0
    %972 = vmatmul.mubr.bf16.gmra.mxu0 %v830
    %v973 = vpop.f32.mrf.mxu0
    %v974 = vadd.f32 %v852, %v973
    %v975 = vpop.f32.mrf.mxu0
    %v976 = vadd.f32 %v856, %v975
    %v977 = vpop.f32.mrf.mxu0
    %v978 = vpop.f32.mrf.mxu0
    %979 = vdwg.mxu0
    %v980 = vld [vmem:[%s7] sm:$0xff]
    %v981 = vld [vmem:[%s7 + $0x8] sm:$0xff]
    %v982 = vld [vmem:[%s7 + $0x10] sm:$0xff]
    %v983 = vld [vmem:[%s7 + $0x18] sm:$0xff]
    %v984 = vld [vmem:[%s7 + $0x20] sm:$0xff]
    %v985 = vld [vmem:[%s7 + $0x28] sm:$0xff]
    %v986 = vld [vmem:[%s7 + $0x30] sm:$0xff]
    %v987 = vld [vmem:[%s7 + $0x38] sm:$0xff]
    %v988 = vld [vmem:[%s7 + $0x40] sm:$0xff]
    %v989 = vld [vmem:[%s7 + $0x48] sm:$0xff]
    %v990 = vld [vmem:[%s7 + $0x50] sm:$0xff]
    %v991 = vld [vmem:[%s7 + $0x58] sm:$0xff]
    %v992 = vld [vmem:[%s7 + $0x60] sm:$0xff]
    %v993 = vld [vmem:[%s7 + $0x68] sm:$0xff]
    %v994 = vld [vmem:[%s7 + $0x70] sm:$0xff]
    %v995 = vld [vmem:[%s7 + $0x78] sm:$0xff]
    %v996 = vlaneseq
    %v997 = vshrl.u32 %v996, 7
    %v998 = vsub.s32 0, %v997
    %v999 = vrot.slane %v974, %v998
    %v1000 = vmul.f32 %v825, %v999
    %1001 = vmatprep.subr.mxu0 0.0
    %1002 = vmatpush1.msra.mxu0 %v995
    %1003 = vmatprep.subr.mxu0 0.0
    %1004 = vmatpush1.msra.mxu0 %v994
    %1005 = vmatprep.subr.mxu0 0.0
    %1006 = vmatpush1.msra.mxu0 %v993
    %1007 = vmatprep.subr.mxu0 0.0
    %1008 = vmatpush1.msra.mxu0 %v992
    %1009 = vmatprep.subr.mxu0 0.0
    %1010 = vmatpush1.msra.mxu0 %v991
    %1011 = vmatprep.subr.mxu0 0.0
    %1012 = vmatpush1.msra.mxu0 %v990
    %1013 = vmatprep.subr.mxu0 0.0
    %1014 = vmatpush1.msra.mxu0 %v989
    %1015 = vmatprep.subr.mxu0 0.0
    %1016 = vmatpush1.msra.mxu0 %v988
    %1017 = vmatprep.subr.mxu0 0.0
    %1018 = vmatpush1.msra.mxu0 %v987
    %1019 = vmatprep.subr.mxu0 0.0
    %1020 = vmatpush1.msra.mxu0 %v986
    %1021 = vmatprep.subr.mxu0 0.0
    %1022 = vmatpush1.msra.mxu0 %v985
    %1023 = vmatprep.subr.mxu0 0.0
    %1024 = vmatpush1.msra.mxu0 %v984
    %1025 = vmatprep.subr.mxu0 0.0
    %1026 = vmatpush1.msra.mxu0 %v983
    %1027 = vmatprep.subr.mxu0 0.0
    %1028 = vmatpush1.msra.mxu0 %v982
    %1029 = vmatprep.subr.mxu0 0.0
    %1030 = vmatpush1.msra.mxu0 %v981
    %1031 = vmatprep.subr.mxu0 0.0
    %1032 = vmatpush1.msra.mxu0 %v980
    %1033 = vmatprep.subr.mxu0 0.0
    %1034 = vmatpush2.msra.mxu0 0.0
    %1035 = vmatprep.subr.mxu0 0.0
    %1036 = vmatpush2.msra.mxu0 0.0
    %1037 = vmatprep.subr.mxu0 0.0
    %1038 = vmatpush2.msra.mxu0 0.0
    %1039 = vmatprep.subr.mxu0 0.0
    %1040 = vmatpush2.msra.mxu0 0.0
    %1041 = vmatprep.subr.mxu0 0.0
    %1042 = vmatpush2.msra.mxu0 0.0
    %1043 = vmatprep.subr.mxu0 0.0
    %1044 = vmatpush2.msra.mxu0 0.0
    %1045 = vmatprep.subr.mxu0 0.0
    %1046 = vmatpush2.msra.mxu0 0.0
    %1047 = vmatprep.subr.mxu0 0.0
    %1048 = vmatpush2.msra.mxu0 0.0
    %1049 = vmatprep.subr.mxu0 0.0
    %1050 = vmatpush2.msra.mxu0 0.0
    %1051 = vmatprep.subr.mxu0 0.0
    %1052 = vmatpush2.msra.mxu0 0.0
    %1053 = vmatprep.subr.mxu0 0.0
    %1054 = vmatpush2.msra.mxu0 0.0
    %1055 = vmatprep.subr.mxu0 0.0
    %1056 = vmatpush2.msra.mxu0 0.0
    %1057 = vmatprep.subr.mxu0 0.0
    %1058 = vmatpush2.msra.mxu0 0.0
    %1059 = vmatprep.subr.mxu0 0.0
    %1060 = vmatpush2.msra.mxu0 0.0
    %1061 = vmatprep.subr.mxu0 0.0
    %1062 = vmatpush2.msra.mxu0 0.0
    %1063 = vmatprep.subr.mxu0 0.0
    %1064 = vmatpush2.msra.mxu0 0.0
    %1065 = vmatprep.mubr.f32.mxu0 0.0
    %1066 = vmatmul.mubr.f32.gmra.mxu0 %v1000
    %v1067 = vpop.f32.mrf.mxu0
    %v1068 = vadd.f32 0.0, %v1067
    %v1069 = vpop.f32.mrf.mxu0
    %1070 = vdwg.mxu0
    %v1071 = vlaneseq
    %v1072 = vshrl.u32 %v1071, 7
    %v1073 = vsub.s32 1, %v1072
    %v1074 = vrot.slane %v974, %v1073
    %v1075 = vmul.f32 %v825, %v1074
    %1076 = vmatprep.subr.mxu0 0.0
    %1077 = vmatpush1.msra.mxu0 %v995
    %1078 = vmatprep.subr.mxu0 0.0
    %1079 = vmatpush1.msra.mxu0 %v994
    %1080 = vmatprep.subr.mxu0 0.0
    %1081 = vmatpush1.msra.mxu0 %v993
    %1082 = vmatprep.subr.mxu0 0.0
    %1083 = vmatpush1.msra.mxu0 %v992
    %1084 = vmatprep.subr.mxu0 0.0
    %1085 = vmatpush1.msra.mxu0 %v991
    %1086 = vmatprep.subr.mxu0 0.0
    %1087 = vmatpush1.msra.mxu0 %v990
    %1088 = vmatprep.subr.mxu0 0.0
    %1089 = vmatpush1.msra.mxu0 %v989
    %1090 = vmatprep.subr.mxu0 0.0
    %1091 = vmatpush1.msra.mxu0 %v988
    %1092 = vmatprep.subr.mxu0 0.0
    %1093 = vmatpush1.msra.mxu0 %v987
    %1094 = vmatprep.subr.mxu0 0.0
    %1095 = vmatpush1.msra.mxu0 %v986
    %1096 = vmatprep.subr.mxu0 0.0
    %1097 = vmatpush1.msra.mxu0 %v985
    %1098 = vmatprep.subr.mxu0 0.0
    %1099 = vmatpush1.msra.mxu0 %v984
    %1100 = vmatprep.subr.mxu0 0.0
    %1101 = vmatpush1.msra.mxu0 %v983
    %1102 = vmatprep.subr.mxu0 0.0
    %1103 = vmatpush1.msra.mxu0 %v982
    %1104 = vmatprep.subr.mxu0 0.0
    %1105 = vmatpush1.msra.mxu0 %v981
    %1106 = vmatprep.subr.mxu0 0.0
    %1107 = vmatpush1.msra.mxu0 %v980
    %1108 = vmatprep.subr.mxu0 0.0
    %1109 = vmatpush2.msra.mxu0 0.0
    %1110 = vmatprep.subr.mxu0 0.0
    %1111 = vmatpush2.msra.mxu0 0.0
    %1112 = vmatprep.subr.mxu0 0.0
    %1113 = vmatpush2.msra.mxu0 0.0
    %1114 = vmatprep.subr.mxu0 0.0
    %1115 = vmatpush2.msra.mxu0 0.0
    %1116 = vmatprep.subr.mxu0 0.0
    %1117 = vmatpush2.msra.mxu0 0.0
    %1118 = vmatprep.subr.mxu0 0.0
    %1119 = vmatpush2.msra.mxu0 0.0
    %1120 = vmatprep.subr.mxu0 0.0
    %1121 = vmatpush2.msra.mxu0 0.0
    %1122 = vmatprep.subr.mxu0 0.0
    %1123 = vmatpush2.msra.mxu0 0.0
    %1124 = vmatprep.subr.mxu0 0.0
    %1125 = vmatpush2.msra.mxu0 0.0
    %1126 = vmatprep.subr.mxu0 0.0
    %1127 = vmatpush2.msra.mxu0 0.0
    %1128 = vmatprep.subr.mxu0 0.0
    %1129 = vmatpush2.msra.mxu0 0.0
    %1130 = vmatprep.subr.mxu0 0.0
    %1131 = vmatpush2.msra.mxu0 0.0
    %1132 = vmatprep.subr.mxu0 0.0
    %1133 = vmatpush2.msra.mxu0 0.0
    %1134 = vmatprep.subr.mxu0 0.0
    %1135 = vmatpush2.msra.mxu0 0.0
    %1136 = vmatprep.subr.mxu0 0.0
    %1137 = vmatpush2.msra.mxu0 0.0
    %1138 = vmatprep.subr.mxu0 0.0
    %1139 = vmatpush2.msra.mxu0 0.0
    %1140 = vmatprep.mubr.f32.mxu0 0.0
    %1141 = vmatmul.mubr.f32.gmra.mxu0 %v1075
    %v1142 = vpop.f32.mrf.mxu0
    %v1143 = vadd.f32 0.0, %v1142
    %v1144 = vpop.f32.mrf.mxu0
    %1145 = vdwg.mxu0
    %v1146 = vmax.f32 %v1068, %v1143
    %v1147 = vsub.f32 %v1068, %v1146
    %v1148 = vmul.f32 %v1147, 1.442695
    %v1149 = vpow.pop %v1148
    %v1150 = vsub.f32 %v1143, %v1146
    %v1151 = vmul.f32 %v1150, 1.442695
    %v1152 = vpow.pop %v1151
    %v1153 = vadd.f32 %v1149, %v1152
    %v1154 = vrcp.pop %v1153
    %v1155 = vmul.f32 %v1149, %v1154
    %v1156 = vlaneseq
    %v1157 = vshrl.u32 %v1156, 7
    %v1158 = vsub.s32 0, %v1157
    %v1159 = vrot.slane %v976, %v1158
    %v1160 = vmul.f32 %v1155, %v1159
    %v1161 = vmul.f32 %v1152, %v1154
    %v1162 = vlaneseq
    %v1163 = vshrl.u32 %v1162, 7
    %v1164 = vsub.s32 1, %v1163
    %v1165 = vrot.slane %v976, %v1164
    %v1166 = vmul.f32 %v1161, %v1165
    %v1167 = vadd.f32 %v1160, %v1166
    %1168 = vst [vmem:[#allocation11] sm:$0x3] %v1167
    %v1169 = vld [vmem:[%s8] sm:$0xff]
    %v1170 = vld [vmem:[%s8 + $0x8] sm:$0xff]
    %v1171 = vld [vmem:[%s8 + $0x10] sm:$0xff]
    %v1172 = vld [vmem:[%s8 + $0x18] sm:$0xff]
    %v1173 = vld [vmem:[%s8 + $0x20] sm:$0xff]
    %v1174 = vld [vmem:[%s8 + $0x28] sm:$0xff]
    %v1175 = vld [vmem:[%s8 + $0x30] sm:$0xff]
    %v1176 = vld [vmem:[%s8 + $0x38] sm:$0xff]
    %v1177 = vld [vmem:[%s8 + $0x40] sm:$0xff]
    %v1178 = vld [vmem:[%s8 + $0x48] sm:$0xff]
    %v1179 = vld [vmem:[%s8 + $0x50] sm:$0xff]
    %v1180 = vld [vmem:[%s8 + $0x58] sm:$0xff]
    %v1181 = vld [vmem:[%s8 + $0x60] sm:$0xff]
    %v1182 = vld [vmem:[%s8 + $0x68] sm:$0xff]
    %v1183 = vld [vmem:[%s8 + $0x70] sm:$0xff]
    %v1184 = vld [vmem:[%s8 + $0x78] sm:$0xff]
    %s1185 = sld [smem:[#allocation2]]
    %v1186 = vstv %s1185
    %1187 = vmatprep.subr.mxu0 0.0
    %1188 = vmatpush1.msra.mxu0 %v1184
    %1189 = vmatprep.subr.mxu0 0.0
    %1190 = vmatpush1.msra.mxu0 %v1183
    %1191 = vmatprep.subr.mxu0 0.0
    %1192 = vmatpush1.msra.mxu0 %v1182
    %1193 = vmatprep.subr.mxu0 0.0
    %1194 = vmatpush1.msra.mxu0 %v1181
    %1195 = vmatprep.subr.mxu0 0.0
    %1196 = vmatpush1.msra.mxu0 %v1180
    %1197 = vmatprep.subr.mxu0 0.0
    %1198 = vmatpush1.msra.mxu0 %v1179
    %1199 = vmatprep.subr.mxu0 0.0
    %1200 = vmatpush1.msra.mxu0 %v1178
    %1201 = vmatprep.subr.mxu0 0.0
    %1202 = vmatpush1.msra.mxu0 %v1177
    %1203 = vmatprep.subr.mxu0 0.0
    %1204 = vmatpush1.msra.mxu0 %v1176
    %1205 = vmatprep.subr.mxu0 0.0
    %1206 = vmatpush1.msra.mxu0 %v1175
    %1207 = vmatprep.subr.mxu0 0.0
    %1208 = vmatpush1.msra.mxu0 %v1174
    %1209 = vmatprep.subr.mxu0 0.0
    %1210 = vmatpush1.msra.mxu0 %v1173
    %1211 = vmatprep.subr.mxu0 0.0
    %1212 = vmatpush1.msra.mxu0 %v1172
    %1213 = vmatprep.subr.mxu0 0.0
    %1214 = vmatpush1.msra.mxu0 %v1171
    %1215 = vmatprep.subr.mxu0 0.0
    %1216 = vmatpush1.msra.mxu0 %v1170
    %1217 = vmatprep.subr.mxu0 0.0
    %1218 = vmatpush1.msra.mxu0 %v1169
    %1219 = vmatprep.subr.mxu0 0.0
    %1220 = vmatpush2.msra.mxu0 0.0
    %1221 = vmatprep.subr.mxu0 0.0
    %1222 = vmatpush2.msra.mxu0 0.0
    %1223 = vmatprep.subr.mxu0 0.0
    %1224 = vmatpush2.msra.mxu0 0.0
    %1225 = vmatprep.subr.mxu0 0.0
    %1226 = vmatpush2.msra.mxu0 0.0
    %1227 = vmatprep.subr.mxu0 0.0
    %1228 = vmatpush2.msra.mxu0 0.0
    %1229 = vmatprep.subr.mxu0 0.0
    %1230 = vmatpush2.msra.mxu0 0.0
    %1231 = vmatprep.subr.mxu0 0.0
    %1232 = vmatpush2.msra.mxu0 0.0
    %1233 = vmatprep.subr.mxu0 0.0
    %1234 = vmatpush2.msra.mxu0 0.0
    %1235 = vmatprep.subr.mxu0 0.0
    %1236 = vmatpush2.msra.mxu0 0.0
    %1237 = vmatprep.subr.mxu0 0.0
    %1238 = vmatpush2.msra.mxu0 0.0
    %1239 = vmatprep.subr.mxu0 0.0
    %1240 = vmatpush2.msra.mxu0 0.0
    %1241 = vmatprep.subr.mxu0 0.0
    %1242 = vmatpush2.msra.mxu0 0.0
    %1243 = vmatprep.subr.mxu0 0.0
    %1244 = vmatpush2.msra.mxu0 0.0
    %1245 = vmatprep.subr.mxu0 0.0
    %1246 = vmatpush2.msra.mxu0 0.0
    %1247 = vmatprep.subr.mxu0 0.0
    %1248 = vmatpush2.msra.mxu0 0.0
    %1249 = vmatprep.subr.mxu0 0.0
    %1250 = vmatpush2.msra.mxu0 0.0
    %1251 = vmatprep.mubr.f32.mxu0 0.0
    %1252 = vmatmul.mubr.f32.gmra.mxu0 %v1167
    %v1253 = vpop.f32.mrf.mxu0
    %v1254 = vadd.f32 %v1186, %v1253
    %v1255 = vpop.f32.mrf.mxu0
    %1256 = vdwg.mxu0
    %v1257 = vsub.f32 %v1254, %v1254
    %v1258 = vmul.f32 %v1257, 1.442695
    %v1259 = vpow.pop %v1258
    %v1260 = vadd.f32 %v1259, 0.0
    %v1261 = vrcp.pop %v1260
    %v1262 = vmul.f32 %v1259, %v1261
    %vm1263 = vcmask 1024
    %1264 = vst.msk [vmem:[%s10] sm:$0x3] %vm1263, %v1262
    // Predicated region
    $region58: #{forward.1} parent=1 // pred_check
      _
    $region59: #{forward.1} parent=1 // pred_check_branch
      %1266 = sbr.rel (0) target = $region61
    $region60: #{forward.1} parent=1 // pred_region
      _
    $region61: #{forward.1} parent=1 // pred_fallthru
      _
    // Predicated region
    $region62: #{forward.1} parent=1 // pred_check
      _
    $region63: #{forward.1} parent=1 // pred_check_branch
      %1268 = sbr.rel (0) target = $region65
    $region64: #{forward.1} parent=1 // pred_region
      %s1270 = ssub.s32 32, 32
      %1271 = vsyncadd [#allocation5], %s1270
      %s1273 = sshll.u32 [#allocation11], 4
      %s1274 = int_to_ptr.vmem [resolvable:$true] %s1273
      %1276 = dma.vmem_to_hbm [thread:$0]  %s1274, 32, %s11, [#allocation5]
    $region65: #{forward.1} parent=1 // pred_fallthru
      _
    // Predicated region
    $region66: #{forward.1} parent=1 // pred_check
      _
    $region67: #{forward.1} parent=1 // pred_check_branch
      %1278 = sbr.rel (0) target = $region69
    $region68: #{forward.1} parent=1 // pred_region
      _
    $region69: #{forward.1} parent=1 // pred_fallthru
      _
    // Predicated region
    $region70: #{forward.1} parent=1 // pred_check
      _
    $region71: #{forward.1} parent=1 // pred_check_branch
      %1280 = sbr.rel (0) target = $region73
    $region72: #{forward.1} parent=1 // pred_region
      %1281 = dma.done [#allocation5], 32
    $region73: #{forward.1} parent=1 // pred_fallthru
      _
    %1282 = vsyncpa [#allocation4], 1
    %1283 = vsyncpa [#allocation7], 1
    %1284 = vsyncpa [#allocation10], 1
    %1285 = vsyncpa [#allocation5], 1

</llo_original>
